<compile_context>
chip_gen: v7x
topology: tpu7x:2x2x1
jax: 0.10.0
libtpu: 0.0.40
codegen_flags: <defaults>
</compile_context>

<pallas_src>
import jax
import jax.numpy as jnp
from jax import lax
from jax.experimental import pallas as pl
from jax.experimental.pallas import tpu as pltpu


def _round_up(n, m):
    return ((n + m - 1) // m) * m


def _linear_dout1_kernel(x_ref, w_ref, b_ref, o_ref):
    # D_out == 1 path: skip the MXU (N=1 would be >99% wasted).
    # x: [TM, D_in] VMEM, w: [1, D_in] VMEM, b: [1, 1] SMEM scalar, out: [TM, 1].
    x = x_ref[...]                                   # [TM, D_in]
    w = w_ref[...]                                   # [1, D_in] -> broadcasts over rows
    acc = jnp.sum(x * w, axis=-1, keepdims=True)     # VPU mul + XLU cross-lane reduce
    o_ref[...] = (acc + b_ref[0, 0]).astype(o_ref.dtype)


def _linear_mxu_kernel(x_ref, w_ref, b_ref, o_ref):
    # General path: contract D_in (last dim of both operands) directly on the MXU,
    # no w.T relayout. x: [TM, D_in], w: [D_out_p, D_in], b: [1, D_out_p].
    acc = lax.dot_general(
        x_ref[...], w_ref[...],
        dimension_numbers=(((1,), (1,)), ((), ())),
        preferred_element_type=jnp.float32,
    )                                                # [TM, D_out_p]
    o_ref[...] = (acc + b_ref[...]).astype(o_ref.dtype)


def linear_forward(x, w, b, *, tm=512):
    """nn.Linear forward. x: [B, D_in] f32, w: [D_out, D_in] f32, b: [D_out] f32."""
    B, D_in = x.shape
    D_out = w.shape[0]

    # Batch tiling: biggest tile that makes sense, rows padded to a TM multiple.
    TM = min(tm, _round_up(B, 8))
    B_pad = _round_up(B, TM)
    if B_pad != B:
        x = jnp.pad(x, ((0, B_pad - B), (0, 0)))
    grid = (B_pad // TM,)
    cparams = pltpu.CompilerParams(dimension_semantics=("parallel",))

    if D_out == 1:
        # Degenerate regression head: VPU reduce, bias as an SMEM scalar.
        b_s = b.reshape(1, 1).astype(jnp.float32)
        out = pl.pallas_call(
            _linear_dout1_kernel,
            out_shape=jax.ShapeDtypeStruct((B_pad, 1), jnp.float32),
            grid=grid,
            in_specs=[
                pl.BlockSpec((TM, D_in), lambda i: (i, 0)),
                pl.BlockSpec((1, D_in), lambda i: (0, 0)),
                pl.BlockSpec(memory_space=pltpu.MemorySpace.SMEM),
            ],
            out_specs=pl.BlockSpec((TM, 1), lambda i: (i, 0)),
            compiler_params=cparams,
        )(x, w, b_s)
    else:
        # Pad D_out to a multiple of 128 so output stores are lane-dense (unmasked).
        D_out_p = _round_up(D_out, 128)
        if D_out_p != D_out:
            w = jnp.pad(w, ((0, D_out_p - D_out), (0, 0)))
            b = jnp.pad(b, (0, D_out_p - D_out))
        b2 = b.reshape(1, D_out_p)
        out = pl.pallas_call(
            _linear_mxu_kernel,
            out_shape=jax.ShapeDtypeStruct((B_pad, D_out_p), jnp.float32),
            grid=grid,
            in_specs=[
                pl.BlockSpec((TM, D_in), lambda i: (i, 0)),
                pl.BlockSpec((D_out_p, D_in), lambda i: (0, 0)),
                pl.BlockSpec((1, D_out_p), lambda i: (0, 0)),
            ],
            out_specs=pl.BlockSpec((TM, D_out_p), lambda i: (i, 0)),
            compiler_params=cparams,
        )(x, w, b2)

    return out[:B, :D_out]


if __name__ == "__main__":
    key = jax.random.PRNGKey(0)

    # --- Case 1: shapes implied by the module (input_dim=28, output_dim=1,
    # batch = int(28 * 0.8) = 22 normalized rows). Exercises the D_out==1 VPU path
    # plus batch padding (22 -> 24 rows).
    batch, input_dim, output_dim = 22, 28, 1
    kx, kw, kb, k2 = jax.random.split(key, 4)

    x = jax.random.normal(kx, (batch, input_dim), dtype=jnp.float32)
    bound = 1.0 / (input_dim ** 0.5)
    w = jax.random.uniform(kw, (output_dim, input_dim), jnp.float32, -bound, bound)
    b = jax.random.uniform(kb, (output_dim,), jnp.float32, -bound, bound)

    out = linear_forward(x, w, b)
    jax.block_until_ready(out)
    ref = x @ w.T + b
    assert out.shape == (batch, output_dim)
    assert jnp.allclose(out, ref, atol=1e-5, rtol=1e-5)

    # --- Case 2: larger multi-output linear to exercise the tiled MXU path
    # (grid of 2 batch tiles, D_out padded 64 -> 128 lanes, sliced back).
    B2, Din2, Dout2 = 256, 128, 64
    ka, kb2, kc = jax.random.split(k2, 3)
    x2 = jax.random.normal(ka, (B2, Din2), dtype=jnp.float32)
    bound2 = 1.0 / (Din2 ** 0.5)
    w2 = jax.random.uniform(kb2, (Dout2, Din2), jnp.float32, -bound2, bound2)
    b2 = jax.random.uniform(kc, (Dout2,), jnp.float32, -bound2, bound2)

    out2 = linear_forward(x2, w2, b2, tm=128)
    jax.block_until_ready(out2)
    ref2 = x2 @ w2.T + b2
    assert out2.shape == (B2, Dout2)
    assert jnp.allclose(out2, ref2, atol=1e-4, rtol=1e-4)

    print("KERNEL_OK")
</pallas_src>

<mosaic_0001>
module attributes {stable_mosaic.version = 11 : i64} {
  func.func @_linear_dout1_kernel(%arg0: i32, %arg1: memref<24x28xf32, #tpu.memory_space<vmem>>, %arg2: memref<1x28xf32, #tpu.memory_space<vmem>>, %arg3: memref<1x1xf32, #tpu.memory_space<smem>>, %arg4: memref<24x1xf32, #tpu.memory_space<vmem>>) attributes {dimension_semantics = [#tpu.dimension_semantics<parallel>], iteration_bounds = array<i64: 1>, scalar_prefetch = 0 : i64, scratch_operands = 0 : i64, tpu.core_type = #tpu.core_type<tc>, window_params = [{transform_indices = @transform_0, window_bounds = array<i64: 24, 28>}, {pipeline_mode = #tpu.pipeline_mode<synchronous>, transform_indices = @transform_1, window_bounds = array<i64: 1, 28>}, {transform_indices = @transform_2, window_bounds = array<i64: 1, 1>}, {transform_indices = @transform_3, window_bounds = array<i64: 24, 1>}]} {
    %c0 = arith.constant 0 : index
    %c0_0 = arith.constant 0 : index
    %0 = vector.load %arg1[%c0, %c0_0] : memref<24x28xf32, #tpu.memory_space<vmem>>, vector<24x28xf32>
    %c0_1 = arith.constant 0 : index
    %c0_2 = arith.constant 0 : index
    %1 = vector.load %arg2[%c0_1, %c0_2] : memref<1x28xf32, #tpu.memory_space<vmem>>, vector<1x28xf32>
    %2 = vector.broadcast %1 : vector<1x28xf32> to vector<24x28xf32>
    %3 = arith.mulf %0, %2 : vector<24x28xf32>
    %cst = arith.constant dense<0.000000e+00> : vector<24xf32>
    %4 = vector.multi_reduction <add>, %3, %cst [1] : vector<24x28xf32> to vector<24xf32>
    %5 = vector.shape_cast %4 : vector<24xf32> to vector<24x1xf32>
    %c0_3 = arith.constant 0 : index
    %c0_4 = arith.constant 0 : index
    %6 = memref.load %arg3[%c0_3, %c0_4] : memref<1x1xf32, #tpu.memory_space<smem>>
    %7 = vector.broadcast %6 : f32 to vector<24x1xf32>
    %8 = arith.addf %5, %7 : vector<24x1xf32>
    %c0_5 = arith.constant 0 : index
    %c0_6 = arith.constant 0 : index
    %9 = vector.load %arg4[%c0_5, %c0_6] : memref<24x1xf32, #tpu.memory_space<vmem>>, vector<24x1xf32>
    tpu.vector_store %arg4[%c0_5, %c0_6], %8 {strides = array<i32>} : memref<24x1xf32, #tpu.memory_space<vmem>>, vector<24x1xf32>,
    return
  }
  func.func @transform_0(%arg0: i32) -> (i32, i32) {
    %c0_i32 = arith.constant 0 : i32
    %c0_i32_0 = arith.constant 0 : i32
    return %arg0, %c0_i32 : i32, i32
  }
  func.func @transform_1(%arg0: i32) -> (i32, i32) {
    %c0_i32 = arith.constant 0 : i32
    %c0_i32_0 = arith.constant 0 : i32
    %c0_i32_1 = arith.constant 0 : i32
    return %c0_i32, %c0_i32_0 : i32, i32
  }
  func.func @transform_2(%arg0: i32) -> (i32, i32) {
    %c0_i32 = arith.constant 0 : i32
    %c0_i32_0 = arith.constant 0 : i32
    %c0_i32_1 = arith.constant 0 : i32
    return %c0_i32, %c0_i32_0 : i32, i32
  }
  func.func @transform_3(%arg0: i32) -> (i32, i32) {
    %c0_i32 = arith.constant 0 : i32
    %c0_i32_0 = arith.constant 0 : i32
    return %arg0, %c0_i32 : i32, i32
  }
}

</mosaic_0001>

<llo_original>
// kernel: tpu_custom_call.1
$region0: #{tpu_custom_call.1}
  #allocation0 [shape = 'u32[]', space=smem, size = 0x4, offset = 0x4, fixed_abs, tag = 'smem constant byte address 0x4 - core index']
  #allocation1 [shape = 'u32[144,128]{1,0:T(1,128)}', space=vmem, size = 0x12000, scoped, tag = 'internal scratch']
  #allocation2 [shape = 'f32[1,1]{1,0:T(1,128)S(6)}', space=smem, size = 0x200, scoped, tag = 'scoped memory for tpu_custom_call.1']
  %s0 = inlined_call_operand.hbm [shape: f32[24,28], index: 0, kind: input, shape index: {}]
  %s1 = inlined_call_operand.vmem [shape: f32[1,28], index: 1, kind: input, shape index: {}]
  %s2 = inlined_call_operand.<no memory space> [shape: f32[1,1], index: 2, kind: input, shape index: {}]
  %s3 = inlined_call_operand.vmem [shape: f32[24,1], index: 3, kind: output, shape index: {}]
  %s4 = sld [smem:[#allocation0]]
  $region26: #{tpu_custom_call.1} parent=0
    _
  %s6 = ssub.s32 1, %s4
  %s7 = scalar_select 0, %s6, %s4
  %8 = sst [smem:[#allocation2]] %s2
  $region1: #{tpu_custom_call.1} parent=0
    #allocation3 [shape = 'u8[12288]{0}', space=vmem, size = 0x3000, scoped, tag = 'input window, operand 0, single buffered']
    #allocation4 [shape = 's32[1]{0}', space=sflag, size = 0x4, scoped, tag = 'scoped memory for tpu_custom_call.1']
    %9 = vsyncpa [#allocation4], 0
    // Predicated region
    $region2: #{tpu_custom_call.1} parent=1 // pred_check
      _
    $region3: #{tpu_custom_call.1} parent=1 // pred_check_branch
      %11 = sbr.rel (0) target = $region5
    $region4: #{tpu_custom_call.1} parent=1 // pred_region
      %s13 = ssub.s32 384, 384
      %14 = vsyncadd [#allocation4], %s13
      %s15 = sshll.u32 [#allocation3], 4
      %s16 = int_to_ptr.vmem [resolvable:$true] %s15
      %21 = dma.hbm_to_vmem [thread:$0]  %s0, 384, %s16, [#allocation4], 128, 128, 8
    $region5: #{tpu_custom_call.1} parent=1 // pred_fallthru
      _
    // Predicated region
    $region6: #{tpu_custom_call.1} parent=1 // pred_check
      _
    $region7: #{tpu_custom_call.1} parent=1 // pred_check_branch
      %23 = sbr.rel (0) target = $region9
    $region8: #{tpu_custom_call.1} parent=1 // pred_region
      _
    $region9: #{tpu_custom_call.1} parent=1 // pred_fallthru
      _
    // Predicated region
    $region10: #{tpu_custom_call.1} parent=1 // pred_check
      _
    $region11: #{tpu_custom_call.1} parent=1 // pred_check_branch
      %25 = sbr.rel (0) target = $region13
    $region12: #{tpu_custom_call.1} parent=1 // pred_region
      _
    $region13: #{tpu_custom_call.1} parent=1 // pred_fallthru
      _
    // Predicated region
    $region14: #{tpu_custom_call.1} parent=1 // pred_check
      _
    $region15: #{tpu_custom_call.1} parent=1 // pred_check_branch
      %27 = sbr.rel (0) target = $region17
    $region16: #{tpu_custom_call.1} parent=1 // pred_region
      %28 = dma.done [#allocation4], 384
    $region17: #{tpu_custom_call.1} parent=1 // pred_fallthru
      _
    %v29 = vld [vmem:[#allocation3] sm:$0xff]
    %v30 = vld [vmem:[#allocation3 + $0x8] sm:$0xff]
    %v31 = vld [vmem:[#allocation3 + $0x10] sm:$0xff]
    %v32 = vld [vmem:[%s1] sm:$0x1]
    %v34 = vlaneseq
    %v35 = vshrl.u32 %v34, 7
    %v36 = vsub.s32 0, %v35
    %v37 = vrot.slane %v32, %v36
    %v39 = vmul.f32 %v29, %v37
    %v40 = vmul.f32 %v30, %v37
    %v41 = vmul.f32 %v31, %v37
    %vm42 = vcmask 228352
    %v43 = vsel %vm42, %v39, 0.0
    %44 = vadd.xlane.f32.xlu0 %v43
    %v45 = vpop.xlane.xlu0 %44
    %v46 = vsel %vm42, %v40, 0.0
    %47 = vadd.xlane.f32.xlu0 %v46
    %v48 = vpop.xlane.xlu0 %47
    %v49 = vsel %vm42, %v41, 0.0
    %50 = vadd.xlane.f32.xlu0 %v49
    %v51 = vpop.xlane.xlu0 %50
    %s52 = sld [smem:[#allocation2]]
    %v53 = vstv %s52
    %v54 = vadd.f32 %v45, %v53
    %v55 = vadd.f32 %v48, %v53
    %v56 = vadd.f32 %v51, %v53
    %vm57 = vcmask 7168
    %58 = vst.msk [vmem:[%s3] sm:$0xff] %vm57, %v54
    %59 = vst.msk [vmem:[%s3 + $0x8] sm:$0xff] %vm57, %v55
    %60 = vst.msk [vmem:[%s3 + $0x10] sm:$0xff] %vm57, %v56
    // Predicated region
    $region18: #{tpu_custom_call.1} parent=1 // pred_check
      _
    $region19: #{tpu_custom_call.1} parent=1 // pred_check_branch
      %62 = sbr.rel (0) target = $region21
    $region20: #{tpu_custom_call.1} parent=1 // pred_region
      _
    $region21: #{tpu_custom_call.1} parent=1 // pred_fallthru
      _
    // Predicated region
    $region22: #{tpu_custom_call.1} parent=1 // pred_check
      _
    $region23: #{tpu_custom_call.1} parent=1 // pred_check_branch
      %64 = sbr.rel (0) target = $region25
    $region24: #{tpu_custom_call.1} parent=1 // pred_region
      _
    $region25: #{tpu_custom_call.1} parent=1 // pred_fallthru
      _
    %65 = vsyncpa [#allocation4], 1

</llo_original>
